<compile_context>
chip_gen: v5e
topology: v5e:2x2
jax: 0.10.0
libtpu: 0.0.40
codegen_flags: <defaults>
</compile_context>

<pallas_src>
import functools

import jax
import jax.numpy as jnp
from jax.experimental import pallas as pl
from jax.experimental.pallas import tpu as pltpu


# --------------------------------------------------------------------------- #
# Phase 1: global min/max -> scalar threshold
# --------------------------------------------------------------------------- #
def _minmax_thr_kernel(x_ref, thr_ref, min_acc, max_acc, *,
                       q, n_valid, block_rows, lanes, mask_tail):
    i = pl.program_id(0)

    @pl.when(i == 0)
    def _init():
        min_acc[...] = jnp.full((1, 1), jnp.inf, jnp.float32)
        max_acc[...] = jnp.full((1, 1), -jnp.inf, jnp.float32)

    x = x_ref[...].astype(jnp.float32)

    if mask_tail:
        # Exclude pad elements (and any out-of-bounds rows of a partial last
        # block) from the reduction.  int32 flat index is fine for < 2^31 elems.
        rows_iota = jax.lax.broadcasted_iota(jnp.int32, (block_rows, lanes), 0)
        cols_iota = jax.lax.broadcasted_iota(jnp.int32, (block_rows, lanes), 1)
        flat_idx = (i * block_rows + rows_iota) * lanes + cols_iota
        valid = flat_idx < n_valid
        x_min_src = jnp.where(valid, x, jnp.inf)
        x_max_src = jnp.where(valid, x, -jnp.inf)
    else:
        x_min_src = x
        x_max_src = x

    min_acc[...] = jnp.minimum(min_acc[...], jnp.min(x_min_src, keepdims=True))
    max_acc[...] = jnp.maximum(max_acc[...], jnp.max(x_max_src, keepdims=True))

    @pl.when(i == pl.num_programs(0) - 1)
    def _finalize():
        xmin = min_acc[...]
        xmax = max_acc[...]
        # Threshold form of (x - min)/(max - min) > q  (no per-element divide).
        # For a constant tensor (xmax == xmin) thr == xmin, so nothing is
        # dropped -- matching the reference's NaN-compare behaviour.
        thr_ref[...] = xmin + jnp.float32(q) * (xmax - xmin)


# --------------------------------------------------------------------------- #
# Phase 2: elementwise masked fill (x > thr  ->  0)
# --------------------------------------------------------------------------- #
def _apply_kernel(thr_ref, x_ref, o_ref):
    x = x_ref[...]
    thr = thr_ref[0, 0]                       # f32 scalar from SMEM
    drop = x.astype(jnp.float32) > thr        # upcast in-VMEM (v5e-safe for bf16)
    o_ref[...] = jnp.where(drop, jnp.zeros_like(x), x)


# --------------------------------------------------------------------------- #
# Wrapper
# --------------------------------------------------------------------------- #
def alpha_dropout_forward(x, dropout=0.1, training=True,
                          lambd=1.0507, alpha=1.67326):
    """Forward pass of the AlphaDropout module (training-mode max-dropout)."""
    # Constants computed in __init__ (unused by forward, kept for fidelity).
    aprime = -lambd * alpha
    q = 1.0 - dropout
    p = dropout
    _a = (q + aprime ** 2 * q * p) ** (-0.5)
    _b = -_a * (p * aprime)  # noqa: F841  (never used in forward)

    if not training:
        return x

    orig_shape = x.shape
    dtype = x.dtype
    n = x.size
    itemsize = jnp.dtype(dtype).itemsize

    # Pick the widest lane count that allows a copy-free, lane-dense reshape
    # (rows must be a multiple of 8).  Otherwise fall back to 512 lanes plus a
    # one-time zero pad; pad values are masked out of the reduction and the
    # padded outputs are sliced off, so the pad value is irrelevant.
    lanes = None
    for cand in (1024, 512, 256, 128):
        if n % cand == 0 and (n // cand) % 8 == 0:
            lanes = cand
            break

    flat = x.reshape(-1)                      # contiguous flatten: no copy
    if lanes is None:
        lanes = 512
        rows = pl.cdiv(n, lanes)
        rows = ((rows + 7) // 8) * 8
        pad = rows * lanes - n
        flat = jnp.pad(flat, (0, pad))
    else:
        rows = n // lanes
        pad = 0

    x2d = flat.reshape(rows, lanes)

    # ~1 MiB blocks: large enough to sit near the HBM roofline, small enough
    # that double-buffered in+out fits every generation's (scoped) VMEM.
    target_rows = max(8, ((1 << 20) // (lanes * itemsize)) // 8 * 8)
    block_rows = min(rows, target_rows)
    grid = (pl.cdiv(rows, block_rows),)
    mask_tail = (pad > 0) or (rows % block_rows != 0)

    compiler_params_reduce = pltpu.CompilerParams(
        dimension_semantics=("arbitrary",),            # global reduction
        vmem_limit_bytes=32 * 1024 * 1024)
    compiler_params_apply = pltpu.CompilerParams(
        dimension_semantics=("parallel",),             # shard across TCs (v7x)
        vmem_limit_bytes=32 * 1024 * 1024)

    reduce_kernel = functools.partial(
        _minmax_thr_kernel, q=q, n_valid=n,
        block_rows=block_rows, lanes=lanes, mask_tail=mask_tail)

    thr = pl.pallas_call(
        reduce_kernel,
        out_shape=jax.ShapeDtypeStruct((1, 1), jnp.float32),
        grid=grid,
        in_specs=[pl.BlockSpec((block_rows, lanes), lambda i: (i, 0))],
        out_specs=pl.BlockSpec((1, 1), lambda i: (0, 0)),
        scratch_shapes=[pltpu.VMEM((1, 1), jnp.float32),
                        pltpu.VMEM((1, 1), jnp.float32)],
        compiler_params=compiler_params_reduce,
        cost_estimate=pl.CostEstimate(flops=2 * n, transcendentals=0,
                                      bytes_accessed=n * itemsize + 4),
    )(x2d)

    out2d = pl.pallas_call(
        _apply_kernel,
        out_shape=jax.ShapeDtypeStruct(x2d.shape, dtype),
        grid=grid,
        in_specs=[pl.BlockSpec((1, 1), lambda i: (0, 0),
                               memory_space=pltpu.SMEM),
                  pl.BlockSpec((block_rows, lanes), lambda i: (i, 0))],
        out_specs=pl.BlockSpec((block_rows, lanes), lambda i: (i, 0)),
        compiler_params=compiler_params_apply,
        cost_estimate=pl.CostEstimate(flops=n, transcendentals=0,
                                      bytes_accessed=2 * n * itemsize + 4),
    )(thr, x2d)

    out = out2d.reshape(-1)[:n].reshape(orig_shape)
    return out


# --------------------------------------------------------------------------- #
# Pure-JAX reference (literal PyTorch formula) and self-test
# --------------------------------------------------------------------------- #
def _reference(x, dropout=0.1):
    q = 1.0 - dropout
    xnorm = (x - x.min()) / (x.max() - x.min())
    return jnp.where(xnorm > q, 0.0, x)


def _check(x, dropout):
    out = jax.block_until_ready(alpha_dropout_forward(x, dropout=dropout,
                                                      training=True))
    assert out.shape == x.shape and out.dtype == x.dtype
    ref = _reference(x, dropout=dropout)
    # The kernel uses the algebraically-identical threshold form; allow a
    # disagreement only for elements within ~1 ulp of the dropout boundary.
    q = 1.0 - dropout
    xn = (x - x.min()) / (x.max() - x.min())
    near_boundary = jnp.abs(xn - q) < 1e-5
    ok = jnp.where(near_boundary, True, jnp.isclose(out, ref, atol=1e-6))
    assert bool(jnp.all(ok)), "mismatch vs pure-JAX reference"


if __name__ == "__main__":
    key = jax.random.PRNGKey(0)
    # NCHW, small shapes: batch=2, channels=4, spatial=16x16
    x = jax.random.normal(key, (2, 4, 16, 16), dtype=jnp.float32)
    _check(x, dropout=0.1)

    # Ragged element count exercises the pad + masked-reduction path.
    x2 = jax.random.normal(jax.random.PRNGKey(1), (3, 5, 7, 11),
                           dtype=jnp.float32)
    _check(x2, dropout=0.2)

    # Eval mode is identity.
    out_eval = jax.block_until_ready(alpha_dropout_forward(x, training=False))
    assert jnp.array_equal(out_eval, x)

    print("KERNEL_OK")
</pallas_src>

<mosaic_0001>
module attributes {stable_mosaic.version = 11 : i64} {
  func.func @_minmax_thr_kernel(%arg0: i32, %arg1: memref<8x256xf32, #tpu.memory_space<vmem>>, %arg2: memref<1x1xf32, #tpu.memory_space<vmem>>, %arg3: memref<1x1xf32, #tpu.memory_space<vmem>>, %arg4: memref<1x1xf32, #tpu.memory_space<vmem>>) attributes {dimension_semantics = [#tpu.dimension_semantics<arbitrary>], iteration_bounds = array<i64: 1>, scalar_prefetch = 0 : i64, scratch_operands = 2 : i64, tpu.core_type = #tpu.core_type<tc>, window_params = [{transform_indices = @transform_0, window_bounds = array<i64: 8, 256>}, {pipeline_mode = #tpu.pipeline_mode<synchronous>, transform_indices = @transform_1, window_bounds = array<i64: 1, 1>}]} {
    %c0_i32 = arith.constant 0 : i32
    %0 = arith.cmpi eq, %arg0, %c0_i32 : i32
    %1 = arith.extui %0 : i1 to i32
    %c0_i32_0 = arith.constant 0 : i32
    %2 = arith.cmpi ne, %1, %c0_i32_0 : i32
    scf.if %2 {
      %cst_13 = arith.constant 0x7F800000 : f32
      %23 = vector.broadcast %cst_13 : f32 to vector<1x1xf32>
      %c0_14 = arith.constant 0 : index
      %c0_15 = arith.constant 0 : index
      %24 = vector.load %arg3[%c0_14, %c0_15] : memref<1x1xf32, #tpu.memory_space<vmem>>, vector<1x1xf32>
      tpu.vector_store %arg3[%c0_14, %c0_15], %23 {strides = array<i32>} : memref<1x1xf32, #tpu.memory_space<vmem>>, vector<1x1xf32>,
      %cst_16 = arith.constant 0xFF800000 : f32
      %25 = vector.broadcast %cst_16 : f32 to vector<1x1xf32>
      %c0_17 = arith.constant 0 : index
      %c0_18 = arith.constant 0 : index
      %26 = vector.load %arg4[%c0_17, %c0_18] : memref<1x1xf32, #tpu.memory_space<vmem>>, vector<1x1xf32>
      tpu.vector_store %arg4[%c0_17, %c0_18], %25 {strides = array<i32>} : memref<1x1xf32, #tpu.memory_space<vmem>>, vector<1x1xf32>,
    } else {
    }
    %c0 = arith.constant 0 : index
    %c0_1 = arith.constant 0 : index
    %3 = vector.load %arg1[%c0, %c0_1] : memref<8x256xf32, #tpu.memory_space<vmem>>, vector<8x256xf32>
    %c0_2 = arith.constant 0 : index
    %c0_3 = arith.constant 0 : index
    %4 = vector.load %arg3[%c0_2, %c0_3] : memref<1x1xf32, #tpu.memory_space<vmem>>, vector<1x1xf32>
    %5 = vector.shape_cast %3 : vector<8x256xf32> to vector<1x8x256xf32>
    %cst = arith.constant dense<0x7F800000> : vector<1xf32>
    %6 = vector.multi_reduction <minimumf>, %5, %cst [1, 2] : vector<1x8x256xf32> to vector<1xf32>
    %7 = vector.shape_cast %6 : vector<1xf32> to vector<1x1x1xf32>
    %8 = vector.extract %7[0, 0, 0] : f32 from vector<1x1x1xf32>
    %9 = vector.broadcast %8 : f32 to vector<1x1xf32>
    %10 = arith.minimumf %4, %9 : vector<1x1xf32>
    %c0_4 = arith.constant 0 : index
    %c0_5 = arith.constant 0 : index
    %11 = vector.load %arg3[%c0_4, %c0_5] : memref<1x1xf32, #tpu.memory_space<vmem>>, vector<1x1xf32>
    tpu.vector_store %arg3[%c0_4, %c0_5], %10 {strides = array<i32>} : memref<1x1xf32, #tpu.memory_space<vmem>>, vector<1x1xf32>,
    %c0_6 = arith.constant 0 : index
    %c0_7 = arith.constant 0 : index
    %12 = vector.load %arg4[%c0_6, %c0_7] : memref<1x1xf32, #tpu.memory_space<vmem>>, vector<1x1xf32>
    %13 = vector.shape_cast %3 : vector<8x256xf32> to vector<1x8x256xf32>
    %cst_8 = arith.constant dense<0xFF800000> : vector<1xf32>
    %14 = vector.multi_reduction <maximumf>, %13, %cst_8 [1, 2] : vector<1x8x256xf32> to vector<1xf32>
    %15 = vector.shape_cast %14 : vector<1xf32> to vector<1x1x1xf32>
    %16 = vector.extract %15[0, 0, 0] : f32 from vector<1x1x1xf32>
    %17 = vector.broadcast %16 : f32 to vector<1x1xf32>
    %18 = arith.maximumf %12, %17 : vector<1x1xf32>
    %c0_9 = arith.constant 0 : index
    %c0_10 = arith.constant 0 : index
    %19 = vector.load %arg4[%c0_9, %c0_10] : memref<1x1xf32, #tpu.memory_space<vmem>>, vector<1x1xf32>
    tpu.vector_store %arg4[%c0_9, %c0_10], %18 {strides = array<i32>} : memref<1x1xf32, #tpu.memory_space<vmem>>, vector<1x1xf32>,
    %c0_i32_11 = arith.constant 0 : i32
    %20 = arith.cmpi eq, %arg0, %c0_i32_11 : i32
    %21 = arith.extui %20 : i1 to i32
    %c0_i32_12 = arith.constant 0 : i32
    %22 = arith.cmpi ne, %21, %c0_i32_12 : i32
    scf.if %22 {
      %c0_13 = arith.constant 0 : index
      %c0_14 = arith.constant 0 : index
      %23 = vector.load %arg3[%c0_13, %c0_14] : memref<1x1xf32, #tpu.memory_space<vmem>>, vector<1x1xf32>
      %c0_15 = arith.constant 0 : index
      %c0_16 = arith.constant 0 : index
      %24 = vector.load %arg4[%c0_15, %c0_16] : memref<1x1xf32, #tpu.memory_space<vmem>>, vector<1x1xf32>
      %25 = arith.subf %24, %23 : vector<1x1xf32>
      %cst_17 = arith.constant 0.899999976 : f32
      %26 = vector.broadcast %cst_17 : f32 to vector<1x1xf32>
      %27 = arith.mulf %26, %25 : vector<1x1xf32>
      %28 = arith.addf %23, %27 : vector<1x1xf32>
      %c0_18 = arith.constant 0 : index
      %c0_19 = arith.constant 0 : index
      %29 = vector.load %arg2[%c0_18, %c0_19] : memref<1x1xf32, #tpu.memory_space<vmem>>, vector<1x1xf32>
      tpu.vector_store %arg2[%c0_18, %c0_19], %28 {strides = array<i32>} : memref<1x1xf32, #tpu.memory_space<vmem>>, vector<1x1xf32>,
    } else {
    }
    return
  }
  func.func @transform_0(%arg0: i32) -> (i32, i32) {
    %c0_i32 = arith.constant 0 : i32
    %c0_i32_0 = arith.constant 0 : i32
    return %arg0, %c0_i32 : i32, i32
  }
  func.func @transform_1(%arg0: i32) -> (i32, i32) {
    %c0_i32 = arith.constant 0 : i32
    %c0_i32_0 = arith.constant 0 : i32
    %c0_i32_1 = arith.constant 0 : i32
    return %c0_i32, %c0_i32_0 : i32, i32
  }
}

</mosaic_0001>

<llo_original>
// kernel: tpu_custom_call.1
$region0: #{tpu_custom_call.1}
  #allocation0 [shape = 'u32[]', space=smem, size = 0x4, offset = 0x4, fixed_abs, tag = 'smem constant byte address 0x4 - core index']
  #allocation1 [shape = 'u32[72,128]{1,0:T(1,128)}', space=vmem, size = 0x9000, scoped, tag = 'internal scratch']
  #allocation2 [shape = 'f32[1,1]{1,0:T(1,128)}', space=vmem, size = 0x200, scoped, tag = 'scratch operand']
  #allocation3 [shape = 'f32[1,1]{1,0:T(1,128)}', space=vmem, size = 0x200, scoped, tag = 'scratch operand']
  %s0 = inlined_call_operand.hbm [shape: f32[8,256], index: 0, kind: input, shape index: {}]
  %s1 = inlined_call_operand.hbm [shape: f32[1,1], index: 1, kind: output, shape index: {}]
  %s2 = sld [smem:[#allocation0]]
  $region26: #{tpu_custom_call.1} parent=0
    _
  %s4 = ssub.s32 1, %s2
  %s5 = scalar_select 0, %s4, %s2
  $region1: #{tpu_custom_call.1} parent=0
    #allocation4 [shape = 'u8[8192]{0}', space=vmem, size = 0x2000, scoped, tag = 'input window, operand 0, single buffered']
    #allocation5 [shape = 's32[1]{0}', space=sflag, size = 0x4, scoped, tag = 'scoped memory for tpu_custom_call.1']
    #allocation6 [shape = 's32[1]{0}', space=sflag, size = 0x4, scoped, tag = 'scoped memory for tpu_custom_call.1']
    #allocation7 [shape = 'u8[512]{0}', space=vmem, size = 0x400, scoped, tag = 'output window, operand 0, single buffered']
    %6 = vsyncpa [#allocation5], 0
    %7 = vsyncpa [#allocation6], 0
    // Predicated region
    $region2: #{tpu_custom_call.1} parent=1 // pred_check
      _
    $region3: #{tpu_custom_call.1} parent=1 // pred_check_branch
      %9 = sbr.rel (0) target = $region5
    $region4: #{tpu_custom_call.1} parent=1 // pred_region
      %11 = vsyncadd [#allocation5], 0
      %s13 = sshll.u32 %s0, 4
      %s14 = int_to_ptr.hbm [resolvable:$true] %s13
      %s15 = sshll.u32 [#allocation4], 4
      %s16 = int_to_ptr.vmem [resolvable:$true] %s15
      %18 = dma.hbm_to_vmem [thread:$0]  %s14, 256, %s16, [#allocation5]
    $region5: #{tpu_custom_call.1} parent=1 // pred_fallthru
      _
    // Predicated region
    $region6: #{tpu_custom_call.1} parent=1 // pred_check
      _
    $region7: #{tpu_custom_call.1} parent=1 // pred_check_branch
      %20 = sbr.rel (0) target = $region9
    $region8: #{tpu_custom_call.1} parent=1 // pred_region
      %22 = dma.done [#allocation5], 256
    $region9: #{tpu_custom_call.1} parent=1 // pred_fallthru
      _
    %p23 = scmp.eq.s32.totalorder 0, 0
    // Predicated region
    $region10: #{tpu_custom_call.1} parent=1 // pred_check
      %p24 = pneg %p23
    $region11: #{tpu_custom_call.1} parent=1 // pred_check_branch
      %26 = sbr.rel (%p24) target = $region13
    $region12: #{tpu_custom_call.1} parent=1 // pred_region
      %vm27 = vcmask 0
      %28 = vst.msk [vmem:[#allocation2] sm:$0x1] %vm27, inf
      %29 = vst.msk [vmem:[#allocation3] sm:$0x1] %vm27, -inf
    $region13: #{tpu_custom_call.1} parent=1 // pred_fallthru
      _
    %v30 = vld [vmem:[#allocation4] sm:$0xff]
    %v31 = vld [vmem:[#allocation4 + $0x8] sm:$0xff]
    %v32 = vld [vmem:[#allocation2] sm:$0x1]
    %v33 = vmin.f32 %v30, %v31
    %34 = vmin.xlane.f32.xlu0 %v33
    %v35 = vpop.xlane.xlu0 %34
    %v36 = vrot.slane %v35, 4
    %v37 = vmin.f32 %v35, %v36
    %v38 = vrot.slane %v37, 2
    %v39 = vmin.f32 %v37, %v38
    %v40 = vrot.slane %v39, 1
    %v41 = vmin.f32 %v39, %v40
    %s42 = vtos %v41
    %v43 = vstv %s42
    %v44 = vmin.f32 %v32, %v43
    %vm45 = vcmask 0
    %46 = vst.msk [vmem:[#allocation2] sm:$0x1] %vm45, %v44
    %v47 = vld [vmem:[#allocation3] sm:$0x1]
    %v48 = vmax.f32 %v30, %v31
    %49 = vmax.xlane.f32.xlu0 %v48
    %v50 = vpop.xlane.xlu0 %49
    %v51 = vrot.slane %v50, 4
    %v52 = vmax.f32 %v50, %v51
    %v53 = vrot.slane %v52, 2
    %v54 = vmax.f32 %v52, %v53
    %v55 = vrot.slane %v54, 1
    %v56 = vmax.f32 %v54, %v55
    %s57 = vtos %v56
    %v58 = vstv %s57
    %v59 = vmax.f32 %v47, %v58
    %60 = vst.msk [vmem:[#allocation3] sm:$0x1] %vm45, %v59
    // Predicated region
    $region14: #{tpu_custom_call.1} parent=1 // pred_check
      %p61 = pneg %p23
    $region15: #{tpu_custom_call.1} parent=1 // pred_check_branch
      %63 = sbr.rel (%p61) target = $region17
    $region16: #{tpu_custom_call.1} parent=1 // pred_region
      %v64 = vld [vmem:[#allocation2] sm:$0x1]
      %v65 = vld [vmem:[#allocation3] sm:$0x1]
      %v66 = vsub.f32 %v65, %v64
      %v67 = vmul.f32 %v66, 0.9
      %v68 = vadd.f32 %v64, %v67
      %69 = vst.msk [vmem:[#allocation7] sm:$0x1] %vm45, %v68
    $region17: #{tpu_custom_call.1} parent=1 // pred_fallthru
      _
    // Predicated region
    $region18: #{tpu_custom_call.1} parent=1 // pred_check
      _
    $region19: #{tpu_custom_call.1} parent=1 // pred_check_branch
      %71 = sbr.rel (0) target = $region21
    $region20: #{tpu_custom_call.1} parent=1 // pred_region
      %73 = vsyncadd [#allocation6], 0
      %s75 = sshll.u32 [#allocation7], 4
      %s76 = int_to_ptr.vmem [resolvable:$true] %s75
      %s77 = sshll.u32 %s1, 4
      %s78 = int_to_ptr.hbm [resolvable:$true] %s77
      %80 = dma.vmem_to_hbm [thread:$0]  %s76, 16, %s78, [#allocation6]
    $region21: #{tpu_custom_call.1} parent=1 // pred_fallthru
      _
    // Predicated region
    $region22: #{tpu_custom_call.1} parent=1 // pred_check
      _
    $region23: #{tpu_custom_call.1} parent=1 // pred_check_branch
      %82 = sbr.rel (0) target = $region25
    $region24: #{tpu_custom_call.1} parent=1 // pred_region
      %84 = dma.done [#allocation6], 16
    $region25: #{tpu_custom_call.1} parent=1 // pred_fallthru
      _
    %85 = vsyncpa [#allocation5], 1
    %86 = vsyncpa [#allocation6], 1

</llo_original>
